<compile_context>
chip_gen: v7x
topology: tpu7x:2x2x1
jax: 0.10.0
libtpu: 0.0.40
codegen_flags: <defaults>
</compile_context>

<pallas_src>
import functools

import jax
import jax.numpy as jnp
from jax.experimental import pallas as pl
from jax.experimental.pallas import tpu as pltpu


def _round_up(n, m):
    return ((n + m - 1) // m) * m


def _cdiv(a, b):
    return (a + b - 1) // b


@functools.lru_cache(maxsize=None)
def _elementwise_dtype():
    """bf16 elementwise chain only where the VPU is bf16-capable (v6e / v7x)."""
    kind = jax.devices()[0].device_kind.lower()
    if "v6" in kind or "v7" in kind:
        return jnp.bfloat16
    return jnp.float32


def mlp_kernel(xT_ref,
               w1_ref, b1_ref,
               w2_ref, b2_ref,
               w3_ref, b3_ref,
               w4_ref, b4_ref,
               o_ref, *, act_dtype):
    """Whole MLP on one (features, TILE_B) batch tile.

    Activations are transposed ("batch-on-lanes"): every intermediate fills all
    128 lanes and the final (1, TILE_B) store is an unmasked lane-dense vst.
    """
    h = xT_ref[...]                                              # (14, T) bf16

    def hidden(w_ref, b_ref, h_bf16):
        # bf16 operands -> MXU native rate, f32 accumulation.  The bias-add /
        # ReLU chain runs in act_dtype (bf16 on v6e/v7x, f32 on v5e).
        acc = jnp.dot(w_ref[...], h_bf16, preferred_element_type=jnp.float32)
        acc = acc.astype(act_dtype) + b_ref[...]
        return jnp.maximum(acc, 0).astype(jnp.bfloat16)

    h = hidden(w1_ref, b1_ref, h)                                # (32, T)
    h = hidden(w2_ref, b2_ref, h)                                # (64, T)
    h = hidden(w3_ref, b3_ref, h)                                # (32, T)
    logits = jnp.dot(w4_ref[...], h,
                     preferred_element_type=jnp.float32) + b4_ref[...]  # (1, T) f32
    o_ref[...] = jax.nn.sigmoid(logits).astype(o_ref.dtype)


def _choose_tiling(batch, tile_b):
    """Return (tile_b, b_pad, num_blocks) with lane-aligned, low-waste tiles."""
    tile_b = max(128, _round_up(tile_b, 128))
    b128 = _round_up(batch, 128)
    num_blocks = _cdiv(b128, tile_b)
    # v7x megacore: keep >= 2 parallel grid blocks whenever the batch is big
    # enough to split; costs nothing on single-TC v5e/v6e.
    if b128 >= 256:
        num_blocks = max(num_blocks, 2)
    tile_b = _round_up(_cdiv(b128, num_blocks), 128)
    b_pad = num_blocks * tile_b
    return tile_b, b_pad, num_blocks


@functools.partial(jax.jit, static_argnames=("tile_b",))
def titanic_mlp(x, params, tile_b=32768):
    """x: (batch, 14) f32.  params: torch-layout [(W(out,in), b(out,)), ...]."""
    (w1, b1), (w2, b2), (w3, b3), (w4, b4) = params
    batch, in_features = x.shape
    out_features = w4.shape[0]

    tile_b, b_pad, num_blocks = _choose_tiling(batch, tile_b)
    grid = (num_blocks,)
    act_dtype = _elementwise_dtype()

    # Single prep pass: cast to bf16 (halves kernel input DMA), zero-pad the
    # batch tail, put batch on the last (lane) axis.
    xT = jnp.pad(x.astype(jnp.bfloat16), ((0, b_pad - batch), (0, 0))).T  # (14, b_pad)

    def wcast(w):                       # weights: tiny, cast once, VMEM-resident
        return w.astype(jnp.bfloat16)

    def bcol(b, dtype):                 # biases as (out, 1) columns
        return b.reshape(-1, 1).astype(dtype)

    inputs = (xT,
              wcast(w1), bcol(b1, act_dtype),
              wcast(w2), bcol(b2, act_dtype),
              wcast(w3), bcol(b3, act_dtype),
              wcast(w4), bcol(b4, jnp.float32))

    def full_spec(arr):                 # whole-array block, constant index map
        return pl.BlockSpec(arr.shape, lambda i: (0, 0))

    in_specs = [pl.BlockSpec((in_features, tile_b), lambda i: (0, i))]
    in_specs += [full_spec(a) for a in inputs[1:]]
    out_specs = pl.BlockSpec((out_features, tile_b), lambda i: (0, i))

    flops = 2 * b_pad * (14 * 32 + 32 * 64 + 64 * 32 + 32 * 1)
    weight_bytes = sum(int(a.size) * a.dtype.itemsize for a in inputs[1:])
    bytes_accessed = (b_pad * in_features * 2          # bf16 input stream
                      + b_pad * out_features * 4       # f32 output
                      + weight_bytes)

    out_T = pl.pallas_call(
        functools.partial(mlp_kernel, act_dtype=act_dtype),
        out_shape=jax.ShapeDtypeStruct((out_features, b_pad), jnp.float32),
        grid=grid,
        in_specs=in_specs,
        out_specs=out_specs,
        compiler_params=pltpu.CompilerParams(
            dimension_semantics=("parallel",)),
        cost_estimate=pl.CostEstimate(
            flops=flops,
            transcendentals=b_pad,
            bytes_accessed=bytes_accessed),
    )(*inputs)

    # Back to torch-style (batch, out_features), dropping batch padding.
    return out_T[:, :batch].T


def init_params(key, input_size=14, output_size=1):
    """Torch-layout params: W is (out_features, in_features), b is (out_features,)."""
    sizes = [(input_size, 32), (32, 64), (64, 32), (32, output_size)]
    params = []
    for fan_in, fan_out in sizes:
        key, kw, kb = jax.random.split(key, 3)
        bound = 1.0 / (fan_in ** 0.5)
        w = jax.random.uniform(kw, (fan_out, fan_in), jnp.float32, -bound, bound)
        b = jax.random.uniform(kb, (fan_out,), jnp.float32, -bound, bound)
        params.append((w, b))
    return params


def reference_forward_f32(x, params):
    """Pure-f32 reference matching the torch module semantics."""
    h = x
    for i, (w, b) in enumerate(params):
        h = h @ w.T + b
        if i < 3:
            h = jnp.maximum(h, 0.0)
    return jax.nn.sigmoid(h)


def reference_forward_kernel_precision(x, params, act_dtype):
    """Reference with the kernel's exact precision policy."""
    (w1, b1), (w2, b2), (w3, b3), (w4, b4) = params
    h = x.astype(jnp.bfloat16).T
    for w, b in ((w1, b1), (w2, b2), (w3, b3)):
        acc = jnp.dot(w.astype(jnp.bfloat16), h, preferred_element_type=jnp.float32)
        acc = acc.astype(act_dtype) + b.reshape(-1, 1).astype(act_dtype)
        h = jnp.maximum(acc, 0).astype(jnp.bfloat16)
    logits = jnp.dot(w4.astype(jnp.bfloat16), h,
                     preferred_element_type=jnp.float32) + b4.reshape(-1, 1)
    return jax.nn.sigmoid(logits).T


if __name__ == "__main__":
    key = jax.random.PRNGKey(0)
    kx, kx2, kp = jax.random.split(key, 3)

    input_size, output_size = 14, 1
    params = init_params(kp, input_size, output_size)
    act_dtype = _elementwise_dtype()

    # Small, torch-shaped input: (batch, 14).
    batch = 8
    x = jax.random.normal(kx, (batch, input_size), jnp.float32)
    out = jax.block_until_ready(titanic_mlp(x, params))
    assert out.shape == (batch, output_size)
    ref_k = reference_forward_kernel_precision(x, params, act_dtype)
    ref_f32 = reference_forward_f32(x, params)
    assert jnp.allclose(out, ref_k, atol=2e-3, rtol=2e-3), (out, ref_k)
    assert jnp.allclose(out, ref_f32, atol=3e-2, rtol=3e-2), (out, ref_f32)

    # Ragged batch exercises 128-alignment padding + the >=2-block grid path.
    batch2 = 300
    x2 = jax.random.normal(kx2, (batch2, input_size), jnp.float32)
    out2 = jax.block_until_ready(titanic_mlp(x2, params))
    assert out2.shape == (batch2, output_size)
    ref2 = reference_forward_kernel_precision(x2, params, act_dtype)
    assert jnp.allclose(out2, ref2, atol=2e-3, rtol=2e-3), (out2, ref2)

    print("KERNEL_OK")
</pallas_src>

<mosaic_0001>
module attributes {stable_mosaic.version = 11 : i64} {
  func.func @mlp_kernel(%arg0: i32, %arg1: memref<14x128xbf16, #tpu.memory_space<vmem>>, %arg2: memref<32x14xbf16, #tpu.memory_space<vmem>>, %arg3: memref<32x1xf32, #tpu.memory_space<vmem>>, %arg4: memref<64x32xbf16, #tpu.memory_space<vmem>>, %arg5: memref<64x1xf32, #tpu.memory_space<vmem>>, %arg6: memref<32x64xbf16, #tpu.memory_space<vmem>>, %arg7: memref<32x1xf32, #tpu.memory_space<vmem>>, %arg8: memref<1x32xbf16, #tpu.memory_space<vmem>>, %arg9: memref<1x1xf32, #tpu.memory_space<vmem>>, %arg10: memref<1x128xf32, #tpu.memory_space<vmem>>) attributes {dimension_semantics = [#tpu.dimension_semantics<parallel>], iteration_bounds = array<i64: 1>, scalar_prefetch = 0 : i64, scratch_operands = 0 : i64, tpu.core_type = #tpu.core_type<tc>, window_params = [{transform_indices = @transform_0, window_bounds = array<i64: 14, 128>}, {pipeline_mode = #tpu.pipeline_mode<synchronous>, transform_indices = @transform_1, window_bounds = array<i64: 32, 14>}, {pipeline_mode = #tpu.pipeline_mode<synchronous>, transform_indices = @transform_2, window_bounds = array<i64: 32, 1>}, {pipeline_mode = #tpu.pipeline_mode<synchronous>, transform_indices = @transform_3, window_bounds = array<i64: 64, 32>}, {pipeline_mode = #tpu.pipeline_mode<synchronous>, transform_indices = @transform_4, window_bounds = array<i64: 64, 1>}, {pipeline_mode = #tpu.pipeline_mode<synchronous>, transform_indices = @transform_5, window_bounds = array<i64: 32, 64>}, {pipeline_mode = #tpu.pipeline_mode<synchronous>, transform_indices = @transform_6, window_bounds = array<i64: 32, 1>}, {pipeline_mode = #tpu.pipeline_mode<synchronous>, transform_indices = @transform_7, window_bounds = array<i64: 1, 32>}, {pipeline_mode = #tpu.pipeline_mode<synchronous>, transform_indices = @transform_8, window_bounds = array<i64: 1, 1>}, {transform_indices = @transform_9, window_bounds = array<i64: 1, 128>}]} {
    %c0 = arith.constant 0 : index
    %c0_0 = arith.constant 0 : index
    %0 = vector.load %arg1[%c0, %c0_0] : memref<14x128xbf16, #tpu.memory_space<vmem>>, vector<14x128xbf16>
    %c0_1 = arith.constant 0 : index
    %c0_2 = arith.constant 0 : index
    %1 = vector.load %arg2[%c0_1, %c0_2] : memref<32x14xbf16, #tpu.memory_space<vmem>>, vector<32x14xbf16>
    %cst = arith.constant dense<0.000000e+00> : vector<32x128xf32>
    %2 = tpu.matmul %1, %0, %cst {dimension_numbers = #tpu.dot_dimension_numbers<[1], [0], [0], [1], [0, 0, 1, 1], [], []>} : vector<32x14xbf16>, vector<14x128xbf16>, vector<32x128xf32> -> vector<32x128xf32>
    %c0_3 = arith.constant 0 : index
    %c0_4 = arith.constant 0 : index
    %3 = vector.load %arg3[%c0_3, %c0_4] : memref<32x1xf32, #tpu.memory_space<vmem>>, vector<32x1xf32>
    %4 = vector.broadcast %3 : vector<32x1xf32> to vector<32x128xf32>
    %5 = arith.addf %2, %4 : vector<32x128xf32>
    %cst_5 = arith.constant 0.000000e+00 : f32
    %6 = vector.broadcast %cst_5 : f32 to vector<32x128xf32>
    %7 = arith.maximumf %5, %6 : vector<32x128xf32>
    %8 = arith.truncf %7 : vector<32x128xf32> to vector<32x128xbf16>
    %c0_6 = arith.constant 0 : index
    %c0_7 = arith.constant 0 : index
    %9 = vector.load %arg4[%c0_6, %c0_7] : memref<64x32xbf16, #tpu.memory_space<vmem>>, vector<64x32xbf16>
    %cst_8 = arith.constant dense<0.000000e+00> : vector<64x128xf32>
    %10 = tpu.matmul %9, %8, %cst_8 {dimension_numbers = #tpu.dot_dimension_numbers<[1], [0], [0], [1], [0, 0, 1, 1], [], []>} : vector<64x32xbf16>, vector<32x128xbf16>, vector<64x128xf32> -> vector<64x128xf32>
    %c0_9 = arith.constant 0 : index
    %c0_10 = arith.constant 0 : index
    %11 = vector.load %arg5[%c0_9, %c0_10] : memref<64x1xf32, #tpu.memory_space<vmem>>, vector<64x1xf32>
    %12 = vector.broadcast %11 : vector<64x1xf32> to vector<64x128xf32>
    %13 = arith.addf %10, %12 : vector<64x128xf32>
    %cst_11 = arith.constant 0.000000e+00 : f32
    %14 = vector.broadcast %cst_11 : f32 to vector<64x128xf32>
    %15 = arith.maximumf %13, %14 : vector<64x128xf32>
    %16 = arith.truncf %15 : vector<64x128xf32> to vector<64x128xbf16>
    %c0_12 = arith.constant 0 : index
    %c0_13 = arith.constant 0 : index
    %17 = vector.load %arg6[%c0_12, %c0_13] : memref<32x64xbf16, #tpu.memory_space<vmem>>, vector<32x64xbf16>
    %cst_14 = arith.constant dense<0.000000e+00> : vector<32x128xf32>
    %18 = tpu.matmul %17, %16, %cst_14 {dimension_numbers = #tpu.dot_dimension_numbers<[1], [0], [0], [1], [0, 0, 1, 1], [], []>} : vector<32x64xbf16>, vector<64x128xbf16>, vector<32x128xf32> -> vector<32x128xf32>
    %c0_15 = arith.constant 0 : index
    %c0_16 = arith.constant 0 : index
    %19 = vector.load %arg7[%c0_15, %c0_16] : memref<32x1xf32, #tpu.memory_space<vmem>>, vector<32x1xf32>
    %20 = vector.broadcast %19 : vector<32x1xf32> to vector<32x128xf32>
    %21 = arith.addf %18, %20 : vector<32x128xf32>
    %cst_17 = arith.constant 0.000000e+00 : f32
    %22 = vector.broadcast %cst_17 : f32 to vector<32x128xf32>
    %23 = arith.maximumf %21, %22 : vector<32x128xf32>
    %24 = arith.truncf %23 : vector<32x128xf32> to vector<32x128xbf16>
    %c0_18 = arith.constant 0 : index
    %c0_19 = arith.constant 0 : index
    %25 = vector.load %arg8[%c0_18, %c0_19] : memref<1x32xbf16, #tpu.memory_space<vmem>>, vector<1x32xbf16>
    %cst_20 = arith.constant dense<0.000000e+00> : vector<1x128xf32>
    %26 = tpu.matmul %25, %24, %cst_20 {dimension_numbers = #tpu.dot_dimension_numbers<[1], [0], [0], [1], [0, 0, 1, 1], [], []>} : vector<1x32xbf16>, vector<32x128xbf16>, vector<1x128xf32> -> vector<1x128xf32>
    %c0_21 = arith.constant 0 : index
    %c0_22 = arith.constant 0 : index
    %27 = vector.load %arg9[%c0_21, %c0_22] : memref<1x1xf32, #tpu.memory_space<vmem>>, vector<1x1xf32>
    %28 = vector.broadcast %27 : vector<1x1xf32> to vector<1x128xf32>
    %29 = arith.addf %26, %28 : vector<1x128xf32>
    %30 = arith.negf %29 : vector<1x128xf32>
    %31 = math.exp %30 : vector<1x128xf32>
    %cst_23 = arith.constant 1.000000e+00 : f32
    %32 = vector.broadcast %cst_23 : f32 to vector<1x128xf32>
    %33 = arith.addf %32, %31 : vector<1x128xf32>
    %34 = arith.divf %32, %33 : vector<1x128xf32>
    %c0_24 = arith.constant 0 : index
    %c0_25 = arith.constant 0 : index
    %35 = vector.load %arg10[%c0_24, %c0_25] : memref<1x128xf32, #tpu.memory_space<vmem>>, vector<1x128xf32>
    tpu.vector_store %arg10[%c0_24, %c0_25], %34 {strides = array<i32>} : memref<1x128xf32, #tpu.memory_space<vmem>>, vector<1x128xf32>,
    return
  }
  func.func @transform_0(%arg0: i32) -> (i32, i32) {
    %c0_i32 = arith.constant 0 : i32
    %c0_i32_0 = arith.constant 0 : i32
    return %c0_i32, %arg0 : i32, i32
  }
  func.func @transform_1(%arg0: i32) -> (i32, i32) {
    %c0_i32 = arith.constant 0 : i32
    %c0_i32_0 = arith.constant 0 : i32
    %c0_i32_1 = arith.constant 0 : i32
    return %c0_i32, %c0_i32_0 : i32, i32
  }
  func.func @transform_2(%arg0: i32) -> (i32, i32) {
    %c0_i32 = arith.constant 0 : i32
    %c0_i32_0 = arith.constant 0 : i32
    %c0_i32_1 = arith.constant 0 : i32
    return %c0_i32, %c0_i32_0 : i32, i32
  }
  func.func @transform_3(%arg0: i32) -> (i32, i32) {
    %c0_i32 = arith.constant 0 : i32
    %c0_i32_0 = arith.constant 0 : i32
    %c0_i32_1 = arith.constant 0 : i32
    return %c0_i32, %c0_i32_0 : i32, i32
  }
  func.func @transform_4(%arg0: i32) -> (i32, i32) {
    %c0_i32 = arith.constant 0 : i32
    %c0_i32_0 = arith.constant 0 : i32
    %c0_i32_1 = arith.constant 0 : i32
    return %c0_i32, %c0_i32_0 : i32, i32
  }
  func.func @transform_5(%arg0: i32) -> (i32, i32) {
    %c0_i32 = arith.constant 0 : i32
    %c0_i32_0 = arith.constant 0 : i32
    %c0_i32_1 = arith.constant 0 : i32
    return %c0_i32, %c0_i32_0 : i32, i32
  }
  func.func @transform_6(%arg0: i32) -> (i32, i32) {
    %c0_i32 = arith.constant 0 : i32
    %c0_i32_0 = arith.constant 0 : i32
    %c0_i32_1 = arith.constant 0 : i32
    return %c0_i32, %c0_i32_0 : i32, i32
  }
  func.func @transform_7(%arg0: i32) -> (i32, i32) {
    %c0_i32 = arith.constant 0 : i32
    %c0_i32_0 = arith.constant 0 : i32
    %c0_i32_1 = arith.constant 0 : i32
    return %c0_i32, %c0_i32_0 : i32, i32
  }
  func.func @transform_8(%arg0: i32) -> (i32, i32) {
    %c0_i32 = arith.constant 0 : i32
    %c0_i32_0 = arith.constant 0 : i32
    %c0_i32_1 = arith.constant 0 : i32
    return %c0_i32, %c0_i32_0 : i32, i32
  }
  func.func @transform_9(%arg0: i32) -> (i32, i32) {
    %c0_i32 = arith.constant 0 : i32
    %c0_i32_0 = arith.constant 0 : i32
    return %c0_i32, %arg0 : i32, i32
  }
}

</mosaic_0001>

<llo_original>
// kernel: titanic_mlp.1
$region0: #{titanic_mlp.1}
  #allocation0 [shape = 'u32[]', space=smem, size = 0x4, offset = 0x4, fixed_abs, tag = 'smem constant byte address 0x4 - core index']
  #allocation1 [shape = 'u32[144,128]{1,0:T(1,128)}', space=vmem, size = 0x12000, scoped, tag = 'internal scratch']
  #allocation2 [shape = 'f32[1,1]{1,0:T(1,128)S(1)}', space=vmem, size = 0x200, scoped, tag = 'scoped memory for titanic_mlp.1']
  %s0 = inlined_call_operand.vmem [shape: bf16[14,128], index: 0, kind: input, shape index: {}]
  %s1 = inlined_call_operand.vmem [shape: bf16[32,14], index: 1, kind: input, shape index: {}]
  %s2 = inlined_call_operand.vmem [shape: f32[32,1], index: 2, kind: input, shape index: {}]
  %s3 = inlined_call_operand.vmem [shape: bf16[64,32], index: 3, kind: input, shape index: {}]
  %s4 = inlined_call_operand.vmem [shape: f32[64,1], index: 4, kind: input, shape index: {}]
  %s5 = inlined_call_operand.vmem [shape: bf16[32,64], index: 5, kind: input, shape index: {}]
  %s6 = inlined_call_operand.vmem [shape: f32[32,1], index: 6, kind: input, shape index: {}]
  %s7 = inlined_call_operand.vmem [shape: bf16[1,32], index: 7, kind: input, shape index: {}]
  %s8 = inlined_call_operand.<no memory space> [shape: f32[1,1], index: 8, kind: input, shape index: {}]
  %s9 = inlined_call_operand.vmem [shape: f32[1,128], index: 9, kind: output, shape index: {}]
  %s10 = sld [smem:[#allocation0]]
  $region46: #{titanic_mlp.1} parent=0
    _
  %s12 = ssub.s32 1, %s10
  %s13 = scalar_select 0, %s12, %s10
  %v14 = vstv %s8
  %15 = vst [vmem:[#allocation2] sm:$0x1] %v14
  // Predicated region
  $region2: #{titanic_mlp.1} parent=0 // pred_check
    _
  $region3: #{titanic_mlp.1} parent=0 // pred_check_branch
    %17 = sbr.rel (0) target = $region5
  $region4: #{titanic_mlp.1} parent=0 // pred_region
    _
  $region5: #{titanic_mlp.1} parent=0 // pred_fallthru
    _
  // Predicated region
  $region6: #{titanic_mlp.1} parent=0 // pred_check
    _
  $region7: #{titanic_mlp.1} parent=0 // pred_check_branch
    %19 = sbr.rel (0) target = $region9
  $region8: #{titanic_mlp.1} parent=0 // pred_region
    _
  $region9: #{titanic_mlp.1} parent=0 // pred_fallthru
    _
  // Predicated region
  $region10: #{titanic_mlp.1} parent=0 // pred_check
    _
  $region11: #{titanic_mlp.1} parent=0 // pred_check_branch
    %21 = sbr.rel (0) target = $region13
  $region12: #{titanic_mlp.1} parent=0 // pred_region
    _
  $region13: #{titanic_mlp.1} parent=0 // pred_fallthru
    _
  // Predicated region
  $region14: #{titanic_mlp.1} parent=0 // pred_check
    _
  $region15: #{titanic_mlp.1} parent=0 // pred_check_branch
    %23 = sbr.rel (0) target = $region17
  $region16: #{titanic_mlp.1} parent=0 // pred_region
    _
  $region17: #{titanic_mlp.1} parent=0 // pred_fallthru
    _
  // Predicated region
  $region18: #{titanic_mlp.1} parent=0 // pred_check
    _
  $region19: #{titanic_mlp.1} parent=0 // pred_check_branch
    %25 = sbr.rel (0) target = $region21
  $region20: #{titanic_mlp.1} parent=0 // pred_region
    _
  $region21: #{titanic_mlp.1} parent=0 // pred_fallthru
    _
  // Predicated region
  $region22: #{titanic_mlp.1} parent=0 // pred_check
    _
  $region23: #{titanic_mlp.1} parent=0 // pred_check_branch
    %27 = sbr.rel (0) target = $region25
  $region24: #{titanic_mlp.1} parent=0 // pred_region
    _
  $region25: #{titanic_mlp.1} parent=0 // pred_fallthru
    _
  // Predicated region
  $region26: #{titanic_mlp.1} parent=0 // pred_check
    _
  $region27: #{titanic_mlp.1} parent=0 // pred_check_branch
    %29 = sbr.rel (0) target = $region29
  $region28: #{titanic_mlp.1} parent=0 // pred_region
    _
  $region29: #{titanic_mlp.1} parent=0 // pred_fallthru
    _
  // Predicated region
  $region30: #{titanic_mlp.1} parent=0 // pred_check
    _
  $region31: #{titanic_mlp.1} parent=0 // pred_check_branch
    %31 = sbr.rel (0) target = $region33
  $region32: #{titanic_mlp.1} parent=0 // pred_region
    _
  $region33: #{titanic_mlp.1} parent=0 // pred_fallthru
    _
  // Predicated region
  $region34: #{titanic_mlp.1} parent=0 // pred_check
    _
  $region35: #{titanic_mlp.1} parent=0 // pred_check_branch
    %33 = sbr.rel (0) target = $region37
  $region36: #{titanic_mlp.1} parent=0 // pred_region
    _
  $region37: #{titanic_mlp.1} parent=0 // pred_fallthru
    _
  %v35 = vld [vmem:[%s0] sm:$0xf]
  %v36 = vld [vmem:[%s0 + $0x4] sm:$0x7]
  %v37 = vld [vmem:[%s1] sm:$0xf]
  %v38 = vld [vmem:[%s1 + $0x4] sm:$0xf]
  %v39 = vld [vmem:[%s1 + $0x8] sm:$0xf]
  %v40 = vld [vmem:[%s1 + $0xc] sm:$0xf]
  %v41 = vld [vmem:[%s2] sm:$0xff]
  %v42 = vld [vmem:[%s2 + $0x8] sm:$0xff]
  %v43 = vld [vmem:[%s2 + $0x10] sm:$0xff]
  %v44 = vld [vmem:[%s2 + $0x18] sm:$0xff]
  %46 = vset.pattern.permute.xlu0 0
  %47 = vperm.xlu0 %46, %v41
  %v48 = vpop.permute.xlu0 %47
  %51 = vset.pattern.permute.xlu0 0
  %52 = vperm.xlu0 %51, %v42
  %v53 = vpop.permute.xlu0 %52
  %56 = vset.pattern.permute.xlu0 0
  %57 = vperm.xlu0 %56, %v43
  %v58 = vpop.permute.xlu0 %57
  %61 = vset.pattern.permute.xlu0 0
  %62 = vperm.xlu0 %61, %v44
  %v63 = vpop.permute.xlu0 %62
  %v69 = vunpack.c.l.b16 %v37
  %v70 = vunpack.c.l.b16 %v38
  %v71 = vunpack.c.l.b16 %v39
  %v72 = vunpack.c.l.b16 %v40
  %v73 = vpack.c.b16 %v70, %v69
  %v74 = vpack.c.b16 %v72, %v71
  %v77 = vunpack.c.l.b16 %v35
  %v78 = vunpack.c.l.b16 %v36
  %v79 = vpack.c.b16 %v78, %v77
  %vm80 = vcmask 113664
  %v82 = vsel %vm80, %v73, 0
  %v85 = vsel %vm80, %v74, 0
  %vm87 = vcmask 1046528
  %v89 = vsel %vm87, %v79, 0
  %91 = vmatprep.subr.bf16.mxu0 0
  %92 = vmatpush1.bf16.msra.mxu0 %v89
  %93 = vmatprep.subr.bf16.mxu0 0
  %94 = vmatpush1.bf16.msra.mxu0 0
  %95 = vmatprep.subr.bf16.mxu0 0
  %96 = vmatpush1.bf16.msra.mxu0 0
  %97 = vmatprep.subr.bf16.mxu0 0
  %98 = vmatpush1.bf16.msra.mxu0 0
  %99 = vmatprep.subr.bf16.mxu0 0
  %100 = vmatpush1.bf16.msra.mxu0 0
  %101 = vmatprep.subr.bf16.mxu0 0
  %102 = vmatpush1.bf16.msra.mxu0 0
  %103 = vmatprep.subr.bf16.mxu0 0
  %104 = vmatpush1.bf16.msra.mxu0 0
  %105 = vmatprep.subr.bf16.mxu0 0
  %106 = vmatpush1.bf16.msra.mxu0 0
  %107 = vmatprep.subr.bf16.mxu0 0
  %108 = vmatpush1.bf16.msra.mxu0 0
  %109 = vmatprep.subr.bf16.mxu0 0
  %110 = vmatpush1.bf16.msra.mxu0 0
  %111 = vmatprep.subr.bf16.mxu0 0
  %112 = vmatpush1.bf16.msra.mxu0 0
  %113 = vmatprep.subr.bf16.mxu0 0
  %114 = vmatpush1.bf16.msra.mxu0 0
  %115 = vmatprep.subr.bf16.mxu0 0
  %116 = vmatpush1.bf16.msra.mxu0 0
  %117 = vmatprep.subr.bf16.mxu0 0
  %118 = vmatpush1.bf16.msra.mxu0 0
  %119 = vmatprep.subr.bf16.mxu0 0
  %120 = vmatpush1.bf16.msra.mxu0 0
  %121 = vmatprep.subr.bf16.mxu0 0
  %122 = vmatpush1.bf16.msra.mxu0 0
  %123 = vmatprep.mubr.bf16.mxu0 0
  %124 = vmatmul.mubr.bf16.gmra.mrb[0].mxu0 %v82
  %v125 = vpop.f32.mrb[0].mxu0
  %v126 = vadd.f32 %v48, %v125
  %v127 = vpop.f32.mrb[0].mxu0
  %v128 = vpop.f32.mrb[0].mxu0
  %v129 = vadd.f32 %v53, %v128
  %v130 = vpop.f32.mrb[0].mxu0
  %131 = vmatprep.mubr.bf16.mxu0 0
  %132 = vmatmul.mubr.bf16.gmra.mrb[0].mxu0 %v85
  %v133 = vpop.f32.mrb[0].mxu0
  %v134 = vadd.f32 %v58, %v133
  %v135 = vpop.f32.mrb[0].mxu0
  %v136 = vpop.f32.mrb[0].mxu0
  %v137 = vadd.f32 %v63, %v136
  %v138 = vpop.f32.mrb[0].mxu0
  %139 = vdwg.mxu0
  %v140 = vmax.f32 %v126, 0.0
  %v141 = vmax.f32 %v129, 0.0
  %v142 = vmax.f32 %v134, 0.0
  %v143 = vmax.f32 %v137, 0.0
  %v144 = vpack.c.bf16 %v141, %v140
  %v145 = vpack.c.bf16 %v143, %v142
  %v146 = vld [vmem:[%s3] sm:$0xf]
  %v147 = vld [vmem:[%s3 + $0x4] sm:$0xf]
  %v148 = vld [vmem:[%s3 + $0x8] sm:$0xf]
  %v149 = vld [vmem:[%s3 + $0xc] sm:$0xf]
  %v150 = vld [vmem:[%s3 + $0x10] sm:$0xf]
  %v151 = vld [vmem:[%s3 + $0x14] sm:$0xf]
  %v152 = vld [vmem:[%s3 + $0x18] sm:$0xf]
  %v153 = vld [vmem:[%s3 + $0x1c] sm:$0xf]
  %v154 = vld [vmem:[%s4] sm:$0xff]
  %v155 = vld [vmem:[%s4 + $0x8] sm:$0xff]
  %v156 = vld [vmem:[%s4 + $0x10] sm:$0xff]
  %v157 = vld [vmem:[%s4 + $0x18] sm:$0xff]
  %v158 = vld [vmem:[%s4 + $0x20] sm:$0xff]
  %v159 = vld [vmem:[%s4 + $0x28] sm:$0xff]
  %v160 = vld [vmem:[%s4 + $0x30] sm:$0xff]
  %v161 = vld [vmem:[%s4 + $0x38] sm:$0xff]
  %163 = vset.pattern.permute.xlu0 0
  %164 = vperm.xlu0 %163, %v154
  %v165 = vpop.permute.xlu0 %164
  %168 = vset.pattern.permute.xlu0 0
  %169 = vperm.xlu0 %168, %v155
  %v170 = vpop.permute.xlu0 %169
  %173 = vset.pattern.permute.xlu0 0
  %174 = vperm.xlu0 %173, %v156
  %v175 = vpop.permute.xlu0 %174
  %178 = vset.pattern.permute.xlu0 0
  %179 = vperm.xlu0 %178, %v157
  %v180 = vpop.permute.xlu0 %179
  %183 = vset.pattern.permute.xlu0 0
  %184 = vperm.xlu0 %183, %v158
  %v185 = vpop.permute.xlu0 %184
  %188 = vset.pattern.permute.xlu0 0
  %189 = vperm.xlu0 %188, %v159
  %v190 = vpop.permute.xlu0 %189
  %193 = vset.pattern.permute.xlu0 0
  %194 = vperm.xlu0 %193, %v160
  %v195 = vpop.permute.xlu0 %194
  %198 = vset.pattern.permute.xlu0 0
  %199 = vperm.xlu0 %198, %v161
  %v200 = vpop.permute.xlu0 %199
  %v210 = vunpack.c.l.b16 %v146
  %v211 = vunpack.c.l.b16 %v147
  %v212 = vunpack.c.l.b16 %v148
  %v213 = vunpack.c.l.b16 %v149
  %v214 = vunpack.c.l.b16 %v150
  %v215 = vunpack.c.l.b16 %v151
  %v216 = vunpack.c.l.b16 %v152
  %v217 = vunpack.c.l.b16 %v153
  %v218 = vpack.c.b16 %v211, %v210
  %v219 = vpack.c.b16 %v213, %v212
  %v220 = vpack.c.b16 %v215, %v214
  %v221 = vpack.c.b16 %v217, %v216
  %vm222 = vcmask 261120
  %v224 = vsel %vm222, %v218, 0
  %v227 = vsel %vm222, %v219, 0
  %v230 = vsel %vm222, %v220, 0
  %v233 = vsel %vm222, %v221, 0
  %235 = vmatprep.subr.bf16.mxu0 0
  %236 = vmatpush1.bf16.msra.mxu0 %v144
  %237 = vmatprep.subr.bf16.mxu0 0
  %238 = vmatpush1.bf16.msra.mxu0 %v145
  %239 = vmatprep.subr.bf16.mxu0 0
  %240 = vmatpush1.bf16.msra.mxu0 0
  %241 = vmatprep.subr.bf16.mxu0 0
  %242 = vmatpush1.bf16.msra.mxu0 0
  %243 = vmatprep.subr.bf16.mxu0 0
  %244 = vmatpush1.bf16.msra.mxu0 0
  %245 = vmatprep.subr.bf16.mxu0 0
  %246 = vmatpush1.bf16.msra.mxu0 0
  %247 = vmatprep.subr.bf16.mxu0 0
  %248 = vmatpush1.bf16.msra.mxu0 0
  %249 = vmatprep.subr.bf16.mxu0 0
  %250 = vmatpush1.bf16.msra.mxu0 0
  %251 = vmatprep.subr.bf16.mxu0 0
  %252 = vmatpush1.bf16.msra.mxu0 0
  %253 = vmatprep.subr.bf16.mxu0 0
  %254 = vmatpush1.bf16.msra.mxu0 0
  %255 = vmatprep.subr.bf16.mxu0 0
  %256 = vmatpush1.bf16.msra.mxu0 0
  %257 = vmatprep.subr.bf16.mxu0 0
  %258 = vmatpush1.bf16.msra.mxu0 0
  %259 = vmatprep.subr.bf16.mxu0 0
  %260 = vmatpush1.bf16.msra.mxu0 0
  %261 = vmatprep.subr.bf16.mxu0 0
  %262 = vmatpush1.bf16.msra.mxu0 0
  %263 = vmatprep.subr.bf16.mxu0 0
  %264 = vmatpush1.bf16.msra.mxu0 0
  %265 = vmatprep.subr.bf16.mxu0 0
  %266 = vmatpush1.bf16.msra.mxu0 0
  %267 = vmatprep.mubr.bf16.mxu0 0
  %268 = vmatmul.mubr.bf16.gmra.mrb[0].mxu0 %v224
  %v269 = vpop.f32.mrb[0].mxu0
  %v270 = vadd.f32 %v165, %v269
  %v271 = vpop.f32.mrb[0].mxu0
  %v272 = vpop.f32.mrb[0].mxu0
  %v273 = vadd.f32 %v170, %v272
  %v274 = vpop.f32.mrb[0].mxu0
  %275 = vmatprep.mubr.bf16.mxu0 0
  %276 = vmatmul.mubr.bf16.gmra.mrb[0].mxu0 %v227
  %v277 = vpop.f32.mrb[0].mxu0
  %v278 = vadd.f32 %v175, %v277
  %v279 = vpop.f32.mrb[0].mxu0
  %v280 = vpop.f32.mrb[0].mxu0
  %v281 = vadd.f32 %v180, %v280
  %v282 = vpop.f32.mrb[0].mxu0
  %283 = vmatprep.mubr.bf16.mxu0 0
  %284 = vmatmul.mubr.bf16.gmra.mrb[0].mxu0 %v230
  %v285 = vpop.f32.mrb[0].mxu0
  %v286 = vadd.f32 %v185, %v285
  %v287 = vpop.f32.mrb[0].mxu0
  %v288 = vpop.f32.mrb[0].mxu0
  %v289 = vadd.f32 %v190, %v288
  %v290 = vpop.f32.mrb[0].mxu0
  %291 = vmatprep.mubr.bf16.mxu0 0
  %292 = vmatmul.mubr.bf16.gmra.mrb[0].mxu0 %v233
  %v293 = vpop.f32.mrb[0].mxu0
  %v294 = vadd.f32 %v195, %v293
  %v295 = vpop.f32.mrb[0].mxu0
  %v296 = vpop.f32.mrb[0].mxu0
  %v297 = vadd.f32 %v200, %v296
  %v298 = vpop.f32.mrb[0].mxu0
  %299 = vdwg.mxu0
  %v300 = vmax.f32 %v270, 0.0
  %v301 = vmax.f32 %v273, 0.0
  %v302 = vmax.f32 %v278, 0.0
  %v303 = vmax.f32 %v281, 0.0
  %v304 = vmax.f32 %v286, 0.0
  %v305 = vmax.f32 %v289, 0.0
  %v306 = vmax.f32 %v294, 0.0
  %v307 = vmax.f32 %v297, 0.0
  %v308 = vpack.c.bf16 %v301, %v300
  %v309 = vpack.c.bf16 %v303, %v302
  %v310 = vpack.c.bf16 %v305, %v304
  %v311 = vpack.c.bf16 %v307, %v306
  %v312 = vld [vmem:[%s5] sm:$0xf]
  %v313 = vld [vmem:[%s5 + $0x4] sm:$0xf]
  %v314 = vld [vmem:[%s5 + $0x8] sm:$0xf]
  %v315 = vld [vmem:[%s5 + $0xc] sm:$0xf]
  %v316 = vld [vmem:[%s6] sm:$0xff]
  %v317 = vld [vmem:[%s6 + $0x8] sm:$0xff]
  %v318 = vld [vmem:[%s6 + $0x10] sm:$0xff]
  %v319 = vld [vmem:[%s6 + $0x18] sm:$0xff]
  %321 = vset.pattern.permute.xlu0 0
  %322 = vperm.xlu0 %321, %v316
  %v323 = vpop.permute.xlu0 %322
  %326 = vset.pattern.permute.xlu0 0
  %327 = vperm.xlu0 %326, %v317
  %v328 = vpop.permute.xlu0 %327
  %331 = vset.pattern.permute.xlu0 0
  %332 = vperm.xlu0 %331, %v318
  %v333 = vpop.permute.xlu0 %332
  %336 = vset.pattern.permute.xlu0 0
  %337 = vperm.xlu0 %336, %v319
  %v338 = vpop.permute.xlu0 %337
  %v344 = vunpack.c.l.b16 %v312
  %v345 = vunpack.c.l.b16 %v313
  %v346 = vunpack.c.l.b16 %v314
  %v347 = vunpack.c.l.b16 %v315
  %v348 = vpack.c.b16 %v345, %v344
  %v349 = vpack.c.b16 %v347, %v346
  %vm350 = vcmask 523264
  %v352 = vsel %vm350, %v348, 0
  %v355 = vsel %vm350, %v349, 0
  %357 = vmatprep.subr.bf16.mxu0 0
  %358 = vmatpush1.bf16.msra.mxu0 %v308
  %359 = vmatprep.subr.bf16.mxu0 0
  %360 = vmatpush1.bf16.msra.mxu0 %v309
  %361 = vmatprep.subr.bf16.mxu0 0
  %362 = vmatpush1.bf16.msra.mxu0 %v310
  %363 = vmatprep.subr.bf16.mxu0 0
  %364 = vmatpush1.bf16.msra.mxu0 %v311
  %365 = vmatprep.subr.bf16.mxu0 0
  %366 = vmatpush1.bf16.msra.mxu0 0
  %367 = vmatprep.subr.bf16.mxu0 0
  %368 = vmatpush1.bf16.msra.mxu0 0
  %369 = vmatprep.subr.bf16.mxu0 0
  %370 = vmatpush1.bf16.msra.mxu0 0
  %371 = vmatprep.subr.bf16.mxu0 0
  %372 = vmatpush1.bf16.msra.mxu0 0
  %373 = vmatprep.subr.bf16.mxu0 0
  %374 = vmatpush1.bf16.msra.mxu0 0
  %375 = vmatprep.subr.bf16.mxu0 0
  %376 = vmatpush1.bf16.msra.mxu0 0
  %377 = vmatprep.subr.bf16.mxu0 0
  %378 = vmatpush1.bf16.msra.mxu0 0
  %379 = vmatprep.subr.bf16.mxu0 0
  %380 = vmatpush1.bf16.msra.mxu0 0
  %381 = vmatprep.subr.bf16.mxu0 0
  %382 = vmatpush1.bf16.msra.mxu0 0
  %383 = vmatprep.subr.bf16.mxu0 0
  %384 = vmatpush1.bf16.msra.mxu0 0
  %385 = vmatprep.subr.bf16.mxu0 0
  %386 = vmatpush1.bf16.msra.mxu0 0
  %387 = vmatprep.subr.bf16.mxu0 0
  %388 = vmatpush1.bf16.msra.mxu0 0
  %389 = vmatprep.mubr.bf16.mxu0 0
  %390 = vmatmul.mubr.bf16.gmra.mrb[0].mxu0 %v352
  %v391 = vpop.f32.mrb[0].mxu0
  %v392 = vadd.f32 %v323, %v391
  %v393 = vpop.f32.mrb[0].mxu0
  %v394 = vpop.f32.mrb[0].mxu0
  %v395 = vadd.f32 %v328, %v394
  %v396 = vpop.f32.mrb[0].mxu0
  %397 = vmatprep.mubr.bf16.mxu0 0
  %398 = vmatmul.mubr.bf16.gmra.mrb[0].mxu0 %v355
  %v399 = vpop.f32.mrb[0].mxu0
  %v400 = vadd.f32 %v333, %v399
  %v401 = vpop.f32.mrb[0].mxu0
  %v402 = vpop.f32.mrb[0].mxu0
  %v403 = vadd.f32 %v338, %v402
  %v404 = vpop.f32.mrb[0].mxu0
  %405 = vdwg.mxu0
  %v406 = vmax.f32 %v392, 0.0
  %v407 = vmax.f32 %v395, 0.0
  %v408 = vmax.f32 %v400, 0.0
  %v409 = vmax.f32 %v403, 0.0
  %v410 = vpack.c.bf16 %v407, %v406
  %v411 = vpack.c.bf16 %v409, %v408
  %v412 = vld [vmem:[%s7] sm:$0x1]
  %v413 = vld [vmem:[#allocation2] sm:$0x1]
  %415 = vset.pattern.permute.xlu0 0
  %416 = vperm.xlu0 %415, %v413
  %v417 = vpop.permute.xlu0 %416
  %v419 = vlaneseq
  %v420 = vshrl.u32 %v419, 7
  %v421 = vsub.s32 0, %v420
  %v422 = vrot.slane %v417, %v421
  %v424 = vsel %vm222, %v412, 0
  %426 = vmatprep.subr.bf16.mxu0 0
  %427 = vmatpush1.bf16.msra.mxu0 %v410
  %428 = vmatprep.subr.bf16.mxu0 0
  %429 = vmatpush1.bf16.msra.mxu0 %v411
  %430 = vmatprep.subr.bf16.mxu0 0
  %431 = vmatpush1.bf16.msra.mxu0 0
  %432 = vmatprep.subr.bf16.mxu0 0
  %433 = vmatpush1.bf16.msra.mxu0 0
  %434 = vmatprep.subr.bf16.mxu0 0
  %435 = vmatpush1.bf16.msra.mxu0 0
  %436 = vmatprep.subr.bf16.mxu0 0
  %437 = vmatpush1.bf16.msra.mxu0 0
  %438 = vmatprep.subr.bf16.mxu0 0
  %439 = vmatpush1.bf16.msra.mxu0 0
  %440 = vmatprep.subr.bf16.mxu0 0
  %441 = vmatpush1.bf16.msra.mxu0 0
  %442 = vmatprep.subr.bf16.mxu0 0
  %443 = vmatpush1.bf16.msra.mxu0 0
  %444 = vmatprep.subr.bf16.mxu0 0
  %445 = vmatpush1.bf16.msra.mxu0 0
  %446 = vmatprep.subr.bf16.mxu0 0
  %447 = vmatpush1.bf16.msra.mxu0 0
  %448 = vmatprep.subr.bf16.mxu0 0
  %449 = vmatpush1.bf16.msra.mxu0 0
  %450 = vmatprep.subr.bf16.mxu0 0
  %451 = vmatpush1.bf16.msra.mxu0 0
  %452 = vmatprep.subr.bf16.mxu0 0
  %453 = vmatpush1.bf16.msra.mxu0 0
  %454 = vmatprep.subr.bf16.mxu0 0
  %455 = vmatpush1.bf16.msra.mxu0 0
  %456 = vmatprep.subr.bf16.mxu0 0
  %457 = vmatpush1.bf16.msra.mxu0 0
  %458 = vmatprep.mubr.bf16.mxu0 0
  %459 = vmatmul.mubr.bf16.gmra.mrb[0].mxu0 %v424
  %v460 = vpop.f32.mrb[0].mxu0
  %v461 = vadd.f32 %v422, %v460
  %v462 = vpop.f32.mrb[0].mxu0
  %v463 = vpop.f32.mrb[0].mxu0
  %v464 = vpop.f32.mrb[0].mxu0
  %465 = vdwg.mxu0
  %v466 = vxor.u32 %v461, 2147483648
  %v467 = vmul.f32 %v466, 1.442695
  %v468 = vpow.pop %v467
  %v469 = vadd.f32 %v468, 1.0
  %v470 = vrcp.pop %v469
  %v471 = vmul.f32 1.0, %v470
  %472 = vst [vmem:[%s9] sm:$0x1] %v471
  // Predicated region
  $region38: #{titanic_mlp.1} parent=0 // pred_check
    _
  $region39: #{titanic_mlp.1} parent=0 // pred_check_branch
    %474 = sbr.rel (0) target = $region41
  $region40: #{titanic_mlp.1} parent=0 // pred_region
    _
  $region41: #{titanic_mlp.1} parent=0 // pred_fallthru
    _
  // Predicated region
  $region42: #{titanic_mlp.1} parent=0 // pred_check
    _
  $region43: #{titanic_mlp.1} parent=0 // pred_check_branch
    %476 = sbr.rel (0) target = $region45
  $region44: #{titanic_mlp.1} parent=0 // pred_region
    _
  $region45: #{titanic_mlp.1} parent=0 // pred_fallthru
    _

</llo_original>
